<compile_context>
chip_gen: v7x
topology: tpu7x:2x2x1
jax: 0.10.0
libtpu: 0.0.40
codegen_flags: <defaults>
</compile_context>

<pallas_src>
import functools
import math

import jax
import jax.numpy as jnp
from jax.experimental import pallas as pl
from jax.experimental.pallas import tpu as pltpu


def _round_up(x, m):
    return ((x + m - 1) // m) * m


def _cdiv(a, b):
    return -(-a // b)


def _sublane_pack(dtype):
    # f32 -> 8 sublanes, bf16 -> 16, int8/fp8 -> 32.
    return max(8, 32 // jnp.dtype(dtype).itemsize)


def _vmem_capacity_bytes():
    """Physical VMEM per TensorCore; conservative 64 MiB if it can't be queried."""
    try:
        info = pltpu.get_tpu_info()
        cap = int(getattr(info, "vmem_capacity_bytes", 0) or 0)
        if cap > 0:
            return cap
    except Exception:
        pass
    return 64 << 20


def _pick_batch_tile(n_batches, padded_rows_per_batch, rows_target):
    divs = [d for d in range(1, n_batches + 1) if n_batches % d == 0]
    # Keep >= 2 blocks on the "parallel" axis whenever possible so both v7x
    # TensorCores stream HBM; a single block only when n_batches == 1.
    pref = [d for d in divs if n_batches // d >= 2] or divs
    fits = [d for d in pref if d * padded_rows_per_batch <= rows_target]
    return fits[-1] if fits else pref[0]


def _channel_layer_kernel(x_ref, w_ref, o_ref, acc_ref, *,
                          inv_len, seq_len, tile_len, needs_mask, use_mxu):
    # x_ref  : (TB, Cg, TL) input window, native dtype
    # w_ref  : (Cg, Cg)     1x1-conv weight (block-diag kron(I_G, W) if grouped)
    # o_ref  : (1, TB, Cg)  output block (resident across the L axis)
    # acc_ref: (TB, Cg)     f32 running sum over L
    l = pl.program_id(1)

    @pl.when(l == 0)
    def _init():
        acc_ref[...] = jnp.zeros_like(acc_ref)

    x = x_ref[...]
    if needs_mask:
        # Ragged tail: zero the lanes past the true sequence length.
        pos = tile_len * l + jax.lax.broadcasted_iota(jnp.int32, x.shape, 2)
        x = jnp.where(pos < seq_len, x, jnp.zeros_like(x))
    # Streaming partial reduce over L, accumulated in f32 (deferred 1/L).
    acc_ref[...] += jnp.sum(x, axis=-1, dtype=jnp.float32)

    @pl.when(l == pl.num_programs(1) - 1)
    def _finalize():
        pooled = acc_ref[...] * inv_len                       # (TB, Cg) f32
        w = w_ref[...].astype(jnp.float32)                    # (Cg, Cg)
        if use_mxu:
            # 1x1 Conv1d (no bias): y[b, o] = sum_i pooled[b, i] * w[o, i]
            y = jax.lax.dot_general(
                pooled, w, dimension_numbers=(((1,), (1,)), ((), ())),
                preferred_element_type=jnp.float32)
        else:
            # Tiny C: broadcast-multiply-sum on the VPU; skip the MXU.
            y = jnp.sum(pooled[:, None, :] * w[None, :, :], axis=-1)
        y = jnp.maximum(y, 0.0)                               # ReLU
        y = 1.0 / (1.0 + jnp.exp(-y))                         # sigmoid (exp -> EUP)
        o_ref[...] = y[None].astype(o_ref.dtype)


def channel_layer(x, weight, *, block_bytes=None):
    """x: (B, C, L); weight: (C_out=C, C_in=C, 1) Conv1d(k=1, bias=False) weight.

    Returns sigmoid(relu(conv1x1(avgpool1d(x)))) with shape (B, C, 1).
    """
    B, C, L = x.shape
    w2d = weight[:, :, 0]                                     # (C_out, C_in)

    itemsize = jnp.dtype(x.dtype).itemsize
    pack = _sublane_pack(x.dtype)

    # ---- Generation-aware budgets. ----
    phys_vmem = _vmem_capacity_bytes()
    if phys_vmem <= (64 << 20):          # v7x-class: 64 MiB physical per TC
        vmem_limit = 40 << 20
        gen_block_budget = 8 << 20
    else:                                # v5e / v6e: 128 MiB physical
        vmem_limit = 80 << 20
        gen_block_budget = 16 << 20
    if block_bytes is not None:
        gen_block_budget = int(block_bytes)

    # ---- Optional batch->channel grouping so tiny C fills the sublane pack. ----
    group = 1
    if C % pack != 0:
        g = pack // math.gcd(C, pack)
        kron_bytes = (g * C) ** 2 * jnp.dtype(w2d.dtype).itemsize
        if (B % g == 0 and kron_bytes <= (1 << 20)
                and (B // g >= 2 or B == 1)):   # keep >=2 parallel blocks (v7x)
            group = g
    Bg, Cg = B // group, group * C
    if group > 1:
        x = x.reshape(Bg, Cg, L)                              # free reshape (contiguous)
        w_k = jnp.kron(jnp.eye(group, dtype=w2d.dtype), w2d)  # block-diagonal (Cg, Cg)
    else:
        w_k = w2d
    cg_pad = _round_up(Cg, pack)

    # ---- Batch tile: big blocks, but >= 2 blocks on the parallel axis. ----
    tl_cap = _round_up(L, 128)
    rows_target = max(pack, gen_block_budget // (tl_cap * itemsize))
    TB = _pick_batch_tile(Bg, cg_pad, rows_target)
    nb = Bg // TB

    # ---- Honest VMEM accounting: sublane/lane padding + double buffering. ----
    w_itemsize = jnp.dtype(w_k.dtype).itemsize
    w_block = _round_up(Cg, _sublane_pack(w_k.dtype)) * _round_up(Cg, 128) * w_itemsize
    out_block = _round_up(TB, pack) * _round_up(Cg, 128) * itemsize
    acc_block = _round_up(TB, 8) * _round_up(Cg, 128) * 4
    fixed = 2 * w_block + 2 * out_block + acc_block + (1 << 20)   # + slack
    per_buffer = max(0, (vmem_limit - fixed) // 2)                # x is double-buffered
    block_budget = min(gen_block_budget, per_buffer)

    # ---- Length tile: multiple of 128, grid = cdiv + in-kernel tail mask. ----
    tl = (block_budget // max(1, TB * cg_pad * itemsize)) // 128 * 128
    if tl >= L:
        tl = L                       # whole L in one tile (block dim == full dim)
    elif tl < 128:
        # TODO(synk): extremely large C can still overflow VMEM here; a C-axis
        # grid split (partial-channel accumulation) would be needed for that.
        tl = min(128, L)
    nl = _cdiv(L, tl)
    needs_mask = (L % tl) != 0

    x_block = TB * cg_pad * _round_up(tl, 128) * itemsize
    vmem_limit = max(vmem_limit, 2 * x_block + fixed)

    kernel = functools.partial(
        _channel_layer_kernel,
        inv_len=float(1.0 / L),
        seq_len=L,
        tile_len=tl,
        needs_mask=needs_mask,
        use_mxu=(Cg >= 128),
    )

    out3 = pl.pallas_call(
        kernel,
        # (nb, TB, Cg) keeps the block's trailing dims equal to the full array
        # dims (legal for any TB / Cg); reshaped back to (B, C) below for free.
        out_shape=jax.ShapeDtypeStruct((nb, TB, Cg), x.dtype),
        grid_spec=pltpu.PrefetchScalarGridSpec(
            num_scalar_prefetch=0,
            grid=(nb, nl),
            in_specs=[
                pl.BlockSpec((TB, Cg, tl), lambda b, l: (b, 0, l)),
                pl.BlockSpec((Cg, Cg), lambda b, l: (0, 0)),
            ],
            out_specs=pl.BlockSpec((1, TB, Cg), lambda b, l: (b, 0, 0)),
            scratch_shapes=[pltpu.VMEM((TB, Cg), jnp.float32)],
        ),
        compiler_params=pltpu.CompilerParams(
            dimension_semantics=("parallel", "arbitrary"),
            vmem_limit_bytes=int(vmem_limit)),
    )(x, w_k)

    return out3.reshape(B, C)[..., None]


def _reference(x, weight):
    pooled = jnp.mean(x.astype(jnp.float32), axis=-1)         # (B, C)
    w = weight[:, :, 0].astype(jnp.float32)
    y = pooled @ w.T
    y = jnp.maximum(y, 0.0)
    return jax.nn.sigmoid(y).astype(x.dtype)[..., None]


if __name__ == "__main__":
    key = jax.random.PRNGKey(0)
    k_x, k_w, k_x2 = jax.random.split(key, 3)

    # Shapes implied by the module: x (batch, inchan, length), inchan = C = 4.
    B, C, L = 2, 4, 16
    x = jax.random.normal(k_x, (B, C, L), dtype=jnp.float32)

    # Deterministic Conv1d(inchan, inchan, 1, bias=False) weight, shape (C, C, 1).
    bound = 1.0 / math.sqrt(C * 1)
    weight = jax.random.uniform(k_w, (C, C, 1), dtype=jnp.float32,
                                minval=-bound, maxval=bound)

    out = jax.block_until_ready(channel_layer(x, weight))
    ref = _reference(x, weight)
    assert out.shape == (B, C, 1), out.shape
    assert jnp.allclose(out, ref, atol=2e-5, rtol=1e-5), (
        f"max err {jnp.max(jnp.abs(out - ref))}")

    # Second check: exercises batch->channel grouping, multi-tile L streaming
    # and the ragged-tail mask (block budget forced small).
    B2, L2 = 4, 800
    x2 = jax.random.normal(k_x2, (B2, C, L2), dtype=jnp.float32)
    out2 = jax.block_until_ready(channel_layer(x2, weight, block_bytes=16 * 1024))
    ref2 = _reference(x2, weight)
    assert out2.shape == (B2, C, 1), out2.shape
    assert jnp.allclose(out2, ref2, atol=2e-5, rtol=1e-5), (
        f"max err {jnp.max(jnp.abs(out2 - ref2))}")

    print("KERNEL_OK")
</pallas_src>

<mosaic_0001>
module attributes {stable_mosaic.version = 11 : i64} {
  func.func @_channel_layer_kernel(%arg0: i32, %arg1: i32, %arg2: memref<1x4x16xf32, #tpu.memory_space<vmem>>, %arg3: memref<4x4xf32, #tpu.memory_space<vmem>>, %arg4: memref<1x1x4xf32, #tpu.memory_space<vmem>>, %arg5: memref<1x4xf32, #tpu.memory_space<vmem>>) attributes {dimension_semantics = [#tpu.dimension_semantics<parallel>, #tpu.dimension_semantics<arbitrary>], iteration_bounds = array<i64: 2, 1>, scalar_prefetch = 0 : i64, scratch_operands = 1 : i64, tpu.core_type = #tpu.core_type<tc>, window_params = [{transform_indices = @transform_0, window_bounds = array<i64: 1, 4, 16>}, {pipeline_mode = #tpu.pipeline_mode<synchronous>, transform_indices = @transform_1, window_bounds = array<i64: 4, 4>}, {transform_indices = @transform_2, window_bounds = array<i64: 1, 1, 4>}]} {
    %c0_i32 = arith.constant 0 : i32
    %0 = arith.cmpi eq, %arg1, %c0_i32 : i32
    %1 = arith.extui %0 : i1 to i32
    %c0_i32_0 = arith.constant 0 : i32
    %2 = arith.cmpi ne, %1, %c0_i32_0 : i32
    scf.if %2 {
      %cst_9 = arith.constant 0.000000e+00 : f32
      %11 = vector.broadcast %cst_9 : f32 to vector<1x4xf32>
      %c0_10 = arith.constant 0 : index
      %c0_11 = arith.constant 0 : index
      %12 = vector.load %arg5[%c0_10, %c0_11] : memref<1x4xf32, #tpu.memory_space<vmem>>, vector<1x4xf32>
      tpu.vector_store %arg5[%c0_10, %c0_11], %11 {strides = array<i32>} : memref<1x4xf32, #tpu.memory_space<vmem>>, vector<1x4xf32>,
    } else {
    }
    %c0 = arith.constant 0 : index
    %c0_1 = arith.constant 0 : index
    %c0_2 = arith.constant 0 : index
    %3 = vector.load %arg2[%c0, %c0_1, %c0_2] : memref<1x4x16xf32, #tpu.memory_space<vmem>>, vector<1x4x16xf32>
    %c0_3 = arith.constant 0 : index
    %c0_4 = arith.constant 0 : index
    %4 = vector.load %arg5[%c0_3, %c0_4] : memref<1x4xf32, #tpu.memory_space<vmem>>, vector<1x4xf32>
    %cst = arith.constant dense<0.000000e+00> : vector<1x4xf32>
    %5 = vector.multi_reduction <add>, %3, %cst [2] : vector<1x4x16xf32> to vector<1x4xf32>
    %6 = arith.addf %4, %5 : vector<1x4xf32>
    %c0_5 = arith.constant 0 : index
    %c0_6 = arith.constant 0 : index
    %7 = vector.load %arg5[%c0_5, %c0_6] : memref<1x4xf32, #tpu.memory_space<vmem>>, vector<1x4xf32>
    tpu.vector_store %arg5[%c0_5, %c0_6], %6 {strides = array<i32>} : memref<1x4xf32, #tpu.memory_space<vmem>>, vector<1x4xf32>,
    %c0_i32_7 = arith.constant 0 : i32
    %8 = arith.cmpi eq, %arg1, %c0_i32_7 : i32
    %9 = arith.extui %8 : i1 to i32
    %c0_i32_8 = arith.constant 0 : i32
    %10 = arith.cmpi ne, %9, %c0_i32_8 : i32
    scf.if %10 {
      %c0_9 = arith.constant 0 : index
      %c0_10 = arith.constant 0 : index
      %11 = vector.load %arg5[%c0_9, %c0_10] : memref<1x4xf32, #tpu.memory_space<vmem>>, vector<1x4xf32>
      %cst_11 = arith.constant 6.250000e-02 : f32
      %12 = vector.broadcast %cst_11 : f32 to vector<1x4xf32>
      %13 = arith.mulf %11, %12 : vector<1x4xf32>
      %c0_12 = arith.constant 0 : index
      %c0_13 = arith.constant 0 : index
      %14 = vector.load %arg3[%c0_12, %c0_13] : memref<4x4xf32, #tpu.memory_space<vmem>>, vector<4x4xf32>
      %15 = vector.shape_cast %13 : vector<1x4xf32> to vector<1x1x4xf32>
      %16 = vector.shape_cast %14 : vector<4x4xf32> to vector<1x4x4xf32>
      %17 = vector.broadcast %15 : vector<1x1x4xf32> to vector<1x4x4xf32>
      %18 = arith.mulf %17, %16 : vector<1x4x4xf32>
      %cst_14 = arith.constant dense<0.000000e+00> : vector<1x4xf32>
      %19 = vector.multi_reduction <add>, %18, %cst_14 [2] : vector<1x4x4xf32> to vector<1x4xf32>
      %cst_15 = arith.constant 0.000000e+00 : f32
      %20 = vector.broadcast %cst_15 : f32 to vector<1x4xf32>
      %21 = arith.maximumf %19, %20 : vector<1x4xf32>
      %cst_16 = arith.constant 0.000000e+00 : f32
      %22 = vector.broadcast %cst_16 : f32 to vector<1x4xf32>
      %23 = arith.subf %22, %21 : vector<1x4xf32>
      %24 = math.exp %23 : vector<1x4xf32>
      %cst_17 = arith.constant 1.000000e+00 : f32
      %25 = vector.broadcast %cst_17 : f32 to vector<1x4xf32>
      %26 = arith.addf %25, %24 : vector<1x4xf32>
      %cst_18 = arith.constant 1.000000e+00 : f32
      %27 = vector.broadcast %cst_18 : f32 to vector<1x4xf32>
      %28 = arith.divf %27, %26 : vector<1x4xf32>
      %29 = vector.shape_cast %28 : vector<1x4xf32> to vector<1x1x4xf32>
      %c0_19 = arith.constant 0 : index
      %c0_20 = arith.constant 0 : index
      %c0_21 = arith.constant 0 : index
      %30 = vector.load %arg4[%c0_19, %c0_20, %c0_21] : memref<1x1x4xf32, #tpu.memory_space<vmem>>, vector<1x1x4xf32>
      tpu.vector_store %arg4[%c0_19, %c0_20, %c0_21], %29 {strides = array<i32>} : memref<1x1x4xf32, #tpu.memory_space<vmem>>, vector<1x1x4xf32>,
    } else {
    }
    return
  }
  func.func @transform_0(%arg0: i32, %arg1: i32) -> (i32, i32, i32) {
    %c0_i32 = arith.constant 0 : i32
    %c0_i32_0 = arith.constant 0 : i32
    return %arg0, %c0_i32, %arg1 : i32, i32, i32
  }
  func.func @transform_1(%arg0: i32, %arg1: i32) -> (i32, i32) {
    %c0_i32 = arith.constant 0 : i32
    %c0_i32_0 = arith.constant 0 : i32
    %c0_i32_1 = arith.constant 0 : i32
    return %c0_i32, %c0_i32_0 : i32, i32
  }
  func.func @transform_2(%arg0: i32, %arg1: i32) -> (i32, i32, i32) {
    %c0_i32 = arith.constant 0 : i32
    %c0_i32_0 = arith.constant 0 : i32
    %c0_i32_1 = arith.constant 0 : i32
    return %arg0, %c0_i32, %c0_i32_0 : i32, i32, i32
  }
}

</mosaic_0001>

<llo_original>
// kernel: tpu_custom_call.1
$region0: #{tpu_custom_call.1}
  #allocation0 [shape = 'u32[]', space=smem, size = 0x4, offset = 0x4, fixed_abs, tag = 'smem constant byte address 0x4 - core index']
  #allocation1 [shape = 'u32[144,128]{1,0:T(1,128)}', space=vmem, size = 0x12000, scoped, tag = 'internal scratch']
  #allocation2 [shape = 'f32[1,4]{1,0:T(1,128)}', space=vmem, size = 0x200, scoped, tag = 'scratch operand']
  %s0 = inlined_call_operand.hbm [shape: f32[2,4,16], index: 0, kind: input, shape index: {}]
  %s1 = inlined_call_operand.hbm [shape: f32[4,4], index: 1, kind: input, shape index: {}]
  %s2 = inlined_call_operand.hbm [shape: f32[2,1,4], index: 2, kind: output, shape index: {}]
  %s3 = sld [smem:[#allocation0]]
  $region57: #{tpu_custom_call.1} parent=0
    _
  %s5 = ssub.s32 1, %s3
  %s6 = scalar_select 0, %s5, %s3
  $region1: #{tpu_custom_call.1} parent=0
    #allocation3 [shape = 'u8[4096]{0}', space=vmem, size = 0x1000, scoped, tag = 'input window, operand 0']
    #allocation4 [shape = 's32[2]{0}', space=sflag, size = 0x8, scoped, tag = 'scoped memory for tpu_custom_call.1']
    #allocation5 [shape = 's32[2]{0}', space=sflag, size = 0x8, scoped, tag = 'scoped memory for tpu_custom_call.1']
    #allocation6 [shape = 'u8[2048]{0}', space=vmem, size = 0x800, scoped, tag = 'input window, operand 1, single buffered']
    #allocation7 [shape = 's32[1]{0}', space=sflag, size = 0x4, scoped, tag = 'scoped memory for tpu_custom_call.1']
    #allocation8 [shape = 'u8[1024]{0}', space=vmem, size = 0x400, scoped, tag = 'output window, operand 0']
    %7 = vsyncpa [#allocation4], 0
    %s8 = scalar_lea.sflag [#allocation4], 1
    %9 = vsyncpa %s8, 0
    %10 = vsyncpa [#allocation7], 0
    %11 = vsyncpa [#allocation5], 0
    %s12 = scalar_lea.sflag [#allocation5], 1
    %13 = vsyncpa %s12, 0
    loop: start=0, step=1, limit=4
    $region2: #{tpu_custom_call.1} parent=1 // loop_pre_header
      _
    $region3: #{tpu_custom_call.1} parent=1 // loop_header
      %s15 = sphi 0, %s19
      %p16 = scmp.ge.s32.totalorder %s15, 4
      %s22 = sphi 0, %s34
      %s23 = sphi 0, %s30
      %s24 = sphi 0, %s22
      %s25 = sphi 0, %s23
      %s26 = sphi 0, %s24
      %s27 = sphi 0, %s25
      %s39 = sphi 0, %s41
      %s42 = sphi 0, %s39
      %s43 = sphi 0, %s42
      %s59 = sphi 0, %s43
      %s63 = sphi 0, %s63
      %s65 = sphi 0, %s63
      %s66 = sphi 0, %s65
      %s80 = sphi 0, %s66
      %s86 = sphi 0, %s88
      %s89 = sphi 0, %s86
      %s90 = sphi 0, %s89
      %s106 = sphi 0, %s90
    $region4: #{tpu_custom_call.1} parent=1 // loop_header_branch
      %18 = sbr.rel (%p16) target = $region8
    $region5: #{tpu_custom_call.1} parent=1 // loop_body
      %s20 = ssub.s32 %s15, 1
      %s21 = ssub.s32 %s15, 2
      %s28 = sadd.s32 1, %s23
      %p29 = scmp.ge.s32.totalorder %s28, 1
      %s30 = scalar_select %p29, 0, %s28
      %s31 = sadd.s32 1, %s22
      %s32 = scalar_select %p29, %s31, %s22
      %p33 = scmp.ge.s32.totalorder %s32, 2
      %s34 = scalar_select %p33, 0, %s32
      %s35 = ssub.s32 %s22, %s34
      %s36 = ssub.s32 %s23, %s30
      %s37 = sor.u32 %s35, %s36
      %p38 = scmp.eq.s32.totalorder %s37, 0
      %s40 = sadd.s32 %s39, 1
      %s41 = scalar_select %p38, %s39, %s40
      %p44 = pneg %p38
      %p45 = scmp.eq.s32.totalorder %s15, 1
      %p46 = por %p44, %p45
      %p47 = scmp.ne.s32.totalorder %s39, %s42
      %p48 = scmp.eq.s32.totalorder %s15, 0
      %p49 = por %p47, %p48
      %p50 = scmp.ne.s32.totalorder %s39, %s42
      %p51 = scmp.eq.s32.totalorder %s20, 1
      %p52 = por %p50, %p51
      %p53 = scmp.ne.s32.totalorder %s42, %s43
      %p54 = scmp.eq.s32.totalorder %s20, 0
      %p55 = por %p53, %p54
      %p56 = scmp.ne.s32.totalorder %s42, %s43
      %p57 = scmp.eq.s32.totalorder %s21, 1
      %p58 = por %p56, %p57
      %p60 = scmp.ne.s32.totalorder %s43, %s59
      %p61 = scmp.eq.s32.totalorder %s21, 0
      %p62 = por %p60, %p61
      %s64 = sadd.s32 %s63, 1
      %p67 = scmp.eq.s32.totalorder %s15, 1
      %p68 = scmp.ne.s32.totalorder %s63, %s65
      %p69 = scmp.eq.s32.totalorder %s15, 0
      %p70 = por %p68, %p69
      %p71 = scmp.ne.s32.totalorder %s63, %s65
      %p72 = scmp.eq.s32.totalorder %s20, 1
      %p73 = por %p71, %p72
      %p74 = scmp.ne.s32.totalorder %s65, %s66
      %p75 = scmp.eq.s32.totalorder %s20, 0
      %p76 = por %p74, %p75
      %p77 = scmp.ne.s32.totalorder %s65, %s66
      %p78 = scmp.eq.s32.totalorder %s21, 1
      %p79 = por %p77, %p78
      %p81 = scmp.ne.s32.totalorder %s66, %s80
      %p82 = scmp.eq.s32.totalorder %s21, 0
      %p83 = por %p81, %p82
      %s84 = ssub.s32 %s22, %s34
      %p85 = scmp.eq.s32.totalorder %s84, 0
      %s87 = sadd.s32 %s86, 1
      %s88 = scalar_select %p85, %s86, %s87
      %p91 = pneg %p85
      %p92 = scmp.eq.s32.totalorder %s15, 1
      %p93 = por %p91, %p92
      %p94 = scmp.ne.s32.totalorder %s86, %s89
      %p95 = scmp.eq.s32.totalorder %s15, 0
      %p96 = por %p94, %p95
      %p97 = scmp.ne.s32.totalorder %s86, %s89
      %p98 = scmp.eq.s32.totalorder %s20, 1
      %p99 = por %p97, %p98
      %p100 = scmp.ne.s32.totalorder %s89, %s90
      %p101 = scmp.eq.s32.totalorder %s20, 0
      %p102 = por %p100, %p101
      %p103 = scmp.ne.s32.totalorder %s89, %s90
      %p104 = scmp.eq.s32.totalorder %s21, 1
      %p105 = por %p103, %p104
      %p107 = scmp.ne.s32.totalorder %s90, %s106
      %p108 = scmp.eq.s32.totalorder %s21, 0
      %p109 = por %p107, %p108
      %p110 = scmp.le.s32.totalorder 1, %s15
      %p111 = scmp.lt.s32.totalorder %s15, 3
      %p112 = pnand %p110, %p111
      %p113 = pneg %p112
      // Predicated region
      $region9: #{tpu_custom_call.1} parent=5 // pred_check
        _
      $region10: #{tpu_custom_call.1} parent=5 // pred_check_branch
        %115 = sbr.rel (%p112) target = $region12
      $region11: #{tpu_custom_call.1} parent=5 // pred_region
        %s116 = ssub.s32 %s15, 1
        // Predicated region
        $region13: #{tpu_custom_call.1} parent=11 // pred_check
          %p117 = pneg %p76
        $region14: #{tpu_custom_call.1} parent=11 // pred_check_branch
          %119 = sbr.rel (%p117) target = $region16
        $region15: #{tpu_custom_call.1} parent=11 // pred_region
          %s121 = ssub.s32 64, 64
          %122 = vsyncadd [#allocation7], %s121
          %s124 = sshll.u32 [#allocation6], 4
          %s125 = int_to_ptr.vmem [resolvable:$true] %s124
          %127 = dma.hbm_to_vmem [thread:$0]  %s1, 64, %s125, [#allocation7]
        $region16: #{tpu_custom_call.1} parent=11 // pred_fallthru
          _
      $region12: #{tpu_custom_call.1} parent=5 // pred_fallthru
        _
      %p128 = scmp.lt.s32.totalorder %s15, 2
      // Predicated region
      $region17: #{tpu_custom_call.1} parent=5 // pred_check
        %p129 = pneg %p128
      $region18: #{tpu_custom_call.1} parent=5 // pred_check_branch
        %131 = sbr.rel (%p129) target = $region20
      $region19: #{tpu_custom_call.1} parent=5 // pred_region
        // Predicated region
        $region21: #{tpu_custom_call.1} parent=19 // pred_check
          %p132 = pneg %p49
        $region22: #{tpu_custom_call.1} parent=19 // pred_check_branch
          %134 = sbr.rel (%p132) target = $region24
        $region23: #{tpu_custom_call.1} parent=19 // pred_region
          %s135 = sand.u32 %s39, 1
          %s136 = scalar_lea.sflag [#allocation4], %s135
          %s137 = sand.u32 %s39, 1
          %s138 = smul.addr %s137, 4
          %s139 = scalar_lea.vmem [#allocation3], %s138
          %s141 = ssub.s32 64, 64
          %142 = vsyncadd %s136, %s141
          %s143 = sadd.s32 %s23, %s22
          %s144 = smul.addr %s143, 64
          %s145 = scalar_lea.hbm %s0, %s144
          %s147 = sshll.u32 %s139, 4
          %s148 = int_to_ptr.vmem [resolvable:$true] %s147
          %150 = dma.hbm_to_vmem [thread:$0]  %s145, 64, %s148, %s136
        $region24: #{tpu_custom_call.1} parent=19 // pred_fallthru
          _
      $region20: #{tpu_custom_call.1} parent=5 // pred_fallthru
        _
      %p151 = scmp.le.s32.totalorder 1, %s15
      %p152 = scmp.lt.s32.totalorder %s15, 3
      %p153 = pnand %p151, %p152
      %p154 = pneg %p153
      // Predicated region
      $region25: #{tpu_custom_call.1} parent=5 // pred_check
        _
      $region26: #{tpu_custom_call.1} parent=5 // pred_check_branch
        %156 = sbr.rel (%p153) target = $region28
      $region27: #{tpu_custom_call.1} parent=5 // pred_region
        %s157 = ssub.s32 %s15, 1
        %s158 = sand.u32 %s42, 1
        %s159 = scalar_lea.sflag [#allocation4], %s158
        %s160 = sand.u32 %s42, 1
        %s161 = smul.addr %s160, 4
        %s162 = scalar_lea.vmem [#allocation3], %s161
        // Predicated region
        $region29: #{tpu_custom_call.1} parent=27 // pred_check
          %p163 = pneg %p55
        $region30: #{tpu_custom_call.1} parent=27 // pred_check_branch
          %165 = sbr.rel (%p163) target = $region32
        $region31: #{tpu_custom_call.1} parent=27 // pred_region
          %166 = dma.done %s159, 64
        $region32: #{tpu_custom_call.1} parent=27 // pred_fallthru
          _
        // Predicated region
        $region33: #{tpu_custom_call.1} parent=27 // pred_check
          %p167 = pneg %p76
        $region34: #{tpu_custom_call.1} parent=27 // pred_check_branch
          %169 = sbr.rel (%p167) target = $region36
        $region35: #{tpu_custom_call.1} parent=27 // pred_region
          %170 = dma.done [#allocation7], 64
        $region36: #{tpu_custom_call.1} parent=27 // pred_fallthru
          _
        %s171 = sand.u32 %s42, 1
        %s172 = scalar_lea.sflag [#allocation4], %s171
        %s173 = sand.u32 %s42, 1
        %s174 = smul.addr %s173, 4
        %s175 = scalar_lea.vmem [#allocation3], %s174
        %p176 = pneg %p55
        %p177 = pneg %p52
        %p178 = pneg %p76
        %p179 = pneg %p73
        %p180 = pneg %p102
        %p181 = pneg %p99
        %s182 = sand.u32 %s89, 1
        %s183 = scalar_lea.sflag [#allocation5], %s182
        %s184 = sand.u32 %s89, 1
        %s185 = scalar_lea.vmem [#allocation8], %s184
        %p186 = scmp.eq.s32.totalorder %s25, 0
        // Predicated region
        $region37: #{tpu_custom_call.1} parent=27 // pred_check
          %p187 = pneg %p186
        $region38: #{tpu_custom_call.1} parent=27 // pred_check_branch
          %189 = sbr.rel (%p187) target = $region40
        $region39: #{tpu_custom_call.1} parent=27 // pred_region
          %vm190 = vcmask 24576
          %191 = vst.msk [vmem:[#allocation2] sm:$0x1] %vm190, 0.0
        $region40: #{tpu_custom_call.1} parent=27 // pred_fallthru
          _
        %v192 = vld [vmem:[%s162] sm:$0xf]
        %v193 = vld [vmem:[#allocation2] sm:$0x1]
        %vm194 = vcmask 125952
        %v195 = vsel %vm194, %v192, 0.0
        %196 = vadd.xlane.f32.xlu0 %v195
        %v197 = vpop.xlane.xlu0 %196
        %v199 = vlaneseq
        %v200 = vshrl.u32 %v199, 7
        %v201 = vsub.s32 0, %v200
        %v202 = vrot.slane %v197, %v201
        %v203 = vlaneseq
        %v204 = vshrl.u32 %v203, 7
        %v205 = vsub.s32 1, %v204
        %v206 = vrot.slane %v197, %v205
        %v207 = vlaneseq
        %v208 = vshrl.u32 %v207, 7
        %v209 = vsub.s32 2, %v208
        %v210 = vrot.slane %v197, %v209
        %v211 = vlaneseq
        %v212 = vshrl.u32 %v211, 7
        %v213 = vsub.s32 3, %v212
        %v214 = vrot.slane %v197, %v213
        %v215 = vcombine.low %v202, %v206
        %v216 = vcombine.low %v210, %v214
        %v218 = vunpack.c.l.s4 1966171168
        %v219 = vunpack.c.0.s8 %v218
        %v220 = vlaneseq
        %v221 = vshrl.u32 %v220, 7
        %v222 = vsub.s32 %v219, %v221
        %v223 = vrot.slane %v215, %v222
        %v225 = vunpack.c.l.s4 1966171168
        %v226 = vunpack.c.0.s8 %v225
        %v227 = vlaneseq
        %v228 = vshrl.u32 %v227, 7
        %v229 = vsub.s32 %v226, %v228
        %v230 = vrot.slane %v216, %v229
        %v231 = vcombine.low %v223, %v230
        %v233 = vunpack.c.l.s4 1966171168
        %v234 = vunpack.c.0.s8 %v233
        %v235 = vlaneseq
        %v236 = vshrl.u32 %v235, 7
        %v237 = vsub.s32 %v234, %v236
        %v238 = vrot.slane %v231, %v237
        %239 = vset.pattern.permute.xlu0 0
        %240 = vperm.xlu0 %239, %v238
        %v241 = vpop.permute.xlu0 %240
        %v242 = vlaneseq
        %v243 = vand.u32 %v242, 127
        %v244 = vlaneseq
        %v245 = vshrl.u32 %v244, 7
        %v246 = vsub.s32 %v243, %v245
        %v247 = vrot.slane %v241, %v246
        %v249 = vunpack.c.l.s4 1966171168
        %v250 = vunpack.c.0.s8 %v249
        %v251 = vlaneseq
        %v252 = vshrl.u32 %v251, 7
        %v253 = vsub.s32 %v250, %v252
        %v254 = vrot.slane %v247, %v253
        %v256 = vunpack.c.l.s4 1966171168
        %v257 = vunpack.c.0.s8 %v256
        %v258 = vlaneseq
        %v259 = vshrl.u32 %v258, 7
        %v260 = vsub.s32 %v257, %v259
        %v261 = vrot.slane %v254, %v260
        %v263 = vadd.f32 %v193, %v261
        %vm264 = vcmask 24576
        %265 = vst.msk [vmem:[#allocation2] sm:$0x1] %vm264, %v263
        // Predicated region
        $region41: #{tpu_custom_call.1} parent=27 // pred_check
          %p266 = pneg %p186
        $region42: #{tpu_custom_call.1} parent=27 // pred_check_branch
          %268 = sbr.rel (%p266) target = $region44
        $region43: #{tpu_custom_call.1} parent=27 // pred_region
          %v269 = vld [vmem:[#allocation2] sm:$0x1]
          %v270 = vmul.f32 %v269, 0.0625
          %v271 = vld [vmem:[#allocation6] sm:$0xf]
          %v273 = vlaneseq
          %v274 = vshrl.u32 %v273, 7
          %v275 = vsub.s32 0, %v274
          %v276 = vrot.slane %v270, %v275
          %v278 = vmul.f32 %v276, %v271
          %vm279 = vcmask 27648
          %v280 = vsel %vm279, %v278, 0.0
          %281 = vadd.xlane.f32.xlu0 %v280
          %v282 = vpop.xlane.xlu0 %281
          %v283 = vmax.f32 %v282, 0.0
          %v284 = vsub.f32 0.0, %v283
          %v285 = vmul.f32 %v284, 1.442695
          %v286 = vpow.pop %v285
          %v287 = vadd.f32 %v286, 1.0
          %v288 = vrcp.pop %v287
          %v289 = vmul.f32 1.0, %v288
          %v291 = vlaneseq
          %v292 = vshrl.u32 %v291, 7
          %v293 = vsub.s32 %v243, %v292
          %v294 = vrot.slane %v289, %v293
          %296 = vst.msk [vmem:[%s185] sm:$0x1] %vm264, %v294
        $region44: #{tpu_custom_call.1} parent=27 // pred_fallthru
          _
        %s297 = sand.u32 %s89, 1
        %s298 = scalar_lea.sflag [#allocation5], %s297
        %s299 = sand.u32 %s89, 1
        %s300 = scalar_lea.vmem [#allocation8], %s299
        // Predicated region
        $region45: #{tpu_custom_call.1} parent=27 // pred_check
          %p301 = pneg %p99
        $region46: #{tpu_custom_call.1} parent=27 // pred_check_branch
          %303 = sbr.rel (%p301) target = $region48
        $region47: #{tpu_custom_call.1} parent=27 // pred_region
          %s305 = ssub.s32 16, 16
          %306 = vsyncadd %s298, %s305
          %s307 = smul.addr %s24, 16
          %s308 = scalar_lea.hbm %s2, %s307
          %s310 = sshll.u32 %s300, 4
          %s311 = int_to_ptr.vmem [resolvable:$true] %s310
          %313 = dma.vmem_to_hbm [thread:$0]  %s311, 16, %s308, %s298
        $region48: #{tpu_custom_call.1} parent=27 // pred_fallthru
          _
      $region28: #{tpu_custom_call.1} parent=5 // pred_fallthru
        _
      %p314 = scmp.le.s32.totalorder 2, %s15
      // Predicated region
      $region49: #{tpu_custom_call.1} parent=5 // pred_check
        %p315 = pneg %p314
      $region50: #{tpu_custom_call.1} parent=5 // pred_check_branch
        %317 = sbr.rel (%p315) target = $region52
      $region51: #{tpu_custom_call.1} parent=5 // pred_region
        %s318 = ssub.s32 %s15, 2
        // Predicated region
        $region53: #{tpu_custom_call.1} parent=51 // pred_check
          %p319 = pneg %p105
        $region54: #{tpu_custom_call.1} parent=51 // pred_check_branch
          %321 = sbr.rel (%p319) target = $region56
        $region55: #{tpu_custom_call.1} parent=51 // pred_region
          %s322 = sand.u32 %s90, 1
          %s323 = scalar_lea.sflag [#allocation5], %s322
          %s324 = sand.u32 %s90, 1
          %s325 = scalar_lea.vmem [#allocation8], %s324
          %326 = dma.done %s323, 16
        $region56: #{tpu_custom_call.1} parent=51 // pred_fallthru
          _
      $region52: #{tpu_custom_call.1} parent=5 // pred_fallthru
        _
    $region6: #{tpu_custom_call.1} parent=1 // loop_footer
      %s19 = sadd.s32 1, %s15
    $region7: #{tpu_custom_call.1} parent=1 // loop_footer_branch
      %14 = sbr.rel target = $region3
    $region8: #{tpu_custom_call.1} parent=1 // loop_exit
      _
    %327 = vsyncpa [#allocation4], 1
    %s328 = scalar_lea.sflag [#allocation4], 1
    %329 = vsyncpa %s328, 1
    %330 = vsyncpa [#allocation7], 1
    %331 = vsyncpa [#allocation5], 1
    %s332 = scalar_lea.sflag [#allocation5], 1
    %333 = vsyncpa %s332, 1

</llo_original>
